<compile_context>
chip_gen: v7x
topology: tpu7x:2x2x1
jax: 0.10.0
libtpu: 0.0.40
codegen_flags: <defaults>
</compile_context>

<pallas_src>
import jax
import jax.numpy as jnp
from jax.experimental import pallas as pl
from jax.experimental.pallas import tpu as pltpu


IN_FEATURES = 150   # 3 * 50
H1 = 30
H2 = 30
OUT_FEATURES = 15   # 6 + 6 + 3


def _softplus(x):
    # Numerically stable softplus (matches torch.nn.Softplus default beta=1).
    return jnp.maximum(x, 0.0) + jnp.log1p(jnp.exp(-jnp.abs(x)))


def encoder_kernel(x_ref, w1_ref, b1_ref, w2_ref, b2_ref, w3_ref, b3_ref, out_ref):
    # x tile may arrive as bf16 (HBM-traffic optimization); compute in f32.
    x = x_ref[...].astype(jnp.float32)                                       # (TN, 150)
    h1 = jnp.dot(x, w1_ref[...], preferred_element_type=jnp.float32) + b1_ref[...]
    h1 = _softplus(h1)                                                       # (TN, 30)
    h2 = jnp.dot(h1, w2_ref[...], preferred_element_type=jnp.float32) + b2_ref[...]
    h2 = _softplus(h2)                                                       # (TN, 30)
    out = jnp.dot(h2, w3_ref[...], preferred_element_type=jnp.float32) + b3_ref[...]
    out_ref[...] = out.astype(out_ref.dtype)                                 # (TN, 15)


def _round_up(n, m):
    return ((n + m - 1) // m) * m


def encoder_forward(inp, params, *, block_rows=2048, x_dtype=jnp.bfloat16):
    """inp: (T, B, 3, 50) -> (qz0_mean (T,B,6), qz0_logstd (T,B,6), context (T,B,3))."""
    T, B, C, D = inp.shape
    assert C * D == IN_FEATURES
    N = T * B

    # Flatten(start_dim=-2) then fold (T,B) into rows; cast input stream to bf16.
    x = inp.reshape(N, C * D).astype(x_dtype)

    w1, b1, w2, b2, w3, b3 = params

    # Row tile: multiple of 8 (sublane), capped by the (rounded-up) row count.
    tn = min(block_rows, _round_up(max(N, 1), 8))
    grid = (pl.cdiv(N, tn),)

    const2d = lambda i: (0, 0)   # weights/biases: same block every step -> resident in VMEM

    out = pl.pallas_call(
        encoder_kernel,
        out_shape=jax.ShapeDtypeStruct((N, OUT_FEATURES), jnp.float32),
        grid=grid,
        in_specs=[
            pl.BlockSpec((tn, IN_FEATURES), lambda i: (i, 0)),   # x tile
            pl.BlockSpec((IN_FEATURES, H1), const2d),            # w1
            pl.BlockSpec((1, H1), const2d),                      # b1
            pl.BlockSpec((H1, H2), const2d),                     # w2
            pl.BlockSpec((1, H2), const2d),                      # b2
            pl.BlockSpec((H2, OUT_FEATURES), const2d),           # w3
            pl.BlockSpec((1, OUT_FEATURES), const2d),            # b3
        ],
        out_specs=pl.BlockSpec((tn, OUT_FEATURES), lambda i: (i, 0)),
        compiler_params=pltpu.CompilerParams(
            dimension_semantics=("parallel",),   # shards row tiles across TCs on v7x
        ),
    )(x, w1, b1, w2, b2, w3, b3)

    out = out.reshape(T, B, OUT_FEATURES)
    qz0_mean = out[..., 0:6]
    qz0_logstd = out[..., 6:12]
    context = out[..., 12:15]
    return qz0_mean, qz0_logstd, context


def init_params(key):
    """Deterministic init mimicking nn.Linear default U(-1/sqrt(fan_in), 1/sqrt(fan_in)).
    Weights stored as (in_features, out_features) so the kernel does x @ W + b."""
    ks = jax.random.split(key, 6)

    def lin(kw, kb, fan_in, fan_out):
        bound = 1.0 / jnp.sqrt(fan_in)
        w = jax.random.uniform(kw, (fan_in, fan_out), jnp.float32, -bound, bound)
        b = jax.random.uniform(kb, (1, fan_out), jnp.float32, -bound, bound)
        return w, b

    w1, b1 = lin(ks[0], ks[1], IN_FEATURES, H1)
    w2, b2 = lin(ks[2], ks[3], H1, H2)
    w3, b3 = lin(ks[4], ks[5], H2, OUT_FEATURES)
    return (w1, b1, w2, b2, w3, b3)


def reference_forward(inp, params, x_dtype=jnp.bfloat16):
    """Pure-JAX reference (applies the same bf16 input quantization as the kernel)."""
    T, B, C, D = inp.shape
    x = inp.reshape(T, B, C * D).astype(x_dtype).astype(jnp.float32)
    w1, b1, w2, b2, w3, b3 = params
    h = jax.nn.softplus(x @ w1 + b1[0])
    h = jax.nn.softplus(h @ w2 + b2[0])
    out = h @ w3 + b3[0]
    return out[..., 0:6], out[..., 6:12], out[..., 12:15]


def _check(inp, params, **kwargs):
    qm, qs, ctx = encoder_forward(inp, params, **kwargs)
    jax.block_until_ready((qm, qs, ctx))
    rm, rs, rc = reference_forward(inp, params)
    T, B = inp.shape[:2]
    assert qm.shape == (T, B, 6)
    assert qs.shape == (T, B, 6)
    assert ctx.shape == (T, B, 3)
    assert jnp.allclose(qm, rm, atol=5e-2, rtol=5e-2)
    assert jnp.allclose(qs, rs, atol=5e-2, rtol=5e-2)
    assert jnp.allclose(ctx, rc, atol=5e-2, rtol=5e-2)


if __name__ == "__main__":
    key = jax.random.PRNGKey(0)
    k1, k2, k_par = jax.random.split(key, 3)
    params = init_params(k_par)

    # Small shape consistent with 'T B 3 50' (single grid step).
    inp_small = jax.random.normal(k1, (8, 2, 3, 50), dtype=jnp.float32)
    _check(inp_small, params)

    # Exercise multi-step grid + masked partial last block: N=300 rows, tile=128.
    inp_grid = jax.random.normal(k2, (50, 6, 3, 50), dtype=jnp.float32)
    _check(inp_grid, params, block_rows=128)

    print("KERNEL_OK")
</pallas_src>

<mosaic_0001>
module attributes {stable_mosaic.version = 11 : i64} {
  func.func @encoder_kernel(%arg0: i32, %arg1: memref<16x150xbf16, #tpu.memory_space<vmem>>, %arg2: memref<150x30xf32, #tpu.memory_space<vmem>>, %arg3: memref<1x30xf32, #tpu.memory_space<vmem>>, %arg4: memref<30x30xf32, #tpu.memory_space<vmem>>, %arg5: memref<1x30xf32, #tpu.memory_space<vmem>>, %arg6: memref<30x15xf32, #tpu.memory_space<vmem>>, %arg7: memref<1x15xf32, #tpu.memory_space<vmem>>, %arg8: memref<16x15xf32, #tpu.memory_space<vmem>>) attributes {dimension_semantics = [#tpu.dimension_semantics<parallel>], iteration_bounds = array<i64: 1>, scalar_prefetch = 0 : i64, scratch_operands = 0 : i64, tpu.core_type = #tpu.core_type<tc>, window_params = [{transform_indices = @transform_0, window_bounds = array<i64: 16, 150>}, {pipeline_mode = #tpu.pipeline_mode<synchronous>, transform_indices = @transform_1, window_bounds = array<i64: 150, 30>}, {pipeline_mode = #tpu.pipeline_mode<synchronous>, transform_indices = @transform_2, window_bounds = array<i64: 1, 30>}, {pipeline_mode = #tpu.pipeline_mode<synchronous>, transform_indices = @transform_3, window_bounds = array<i64: 30, 30>}, {pipeline_mode = #tpu.pipeline_mode<synchronous>, transform_indices = @transform_4, window_bounds = array<i64: 1, 30>}, {pipeline_mode = #tpu.pipeline_mode<synchronous>, transform_indices = @transform_5, window_bounds = array<i64: 30, 15>}, {pipeline_mode = #tpu.pipeline_mode<synchronous>, transform_indices = @transform_6, window_bounds = array<i64: 1, 15>}, {transform_indices = @transform_7, window_bounds = array<i64: 16, 15>}]} {
    %c0 = arith.constant 0 : index
    %c0_0 = arith.constant 0 : index
    %0 = vector.load %arg1[%c0, %c0_0] : memref<16x150xbf16, #tpu.memory_space<vmem>>, vector<16x150xbf16>
    %1 = arith.extf %0 : vector<16x150xbf16> to vector<16x150xf32>
    %c0_1 = arith.constant 0 : index
    %c0_2 = arith.constant 0 : index
    %2 = vector.load %arg2[%c0_1, %c0_2] : memref<150x30xf32, #tpu.memory_space<vmem>>, vector<150x30xf32>
    %cst = arith.constant dense<0.000000e+00> : vector<16x30xf32>
    %3 = tpu.matmul %1, %2, %cst {dimension_numbers = #tpu.dot_dimension_numbers<[1], [0], [0], [1], [0, 0, 1, 1], [], []>} : vector<16x150xf32>, vector<150x30xf32>, vector<16x30xf32> -> vector<16x30xf32>
    %c0_3 = arith.constant 0 : index
    %c0_4 = arith.constant 0 : index
    %4 = vector.load %arg3[%c0_3, %c0_4] : memref<1x30xf32, #tpu.memory_space<vmem>>, vector<1x30xf32>
    %5 = vector.broadcast %4 : vector<1x30xf32> to vector<16x30xf32>
    %6 = arith.addf %3, %5 : vector<16x30xf32>
    %cst_5 = arith.constant 0.000000e+00 : f32
    %7 = vector.broadcast %cst_5 : f32 to vector<16x30xf32>
    %8 = arith.maximumf %6, %7 : vector<16x30xf32>
    %9 = math.absf %6 : vector<16x30xf32>
    %cst_6 = arith.constant 0.000000e+00 : f32
    %10 = vector.broadcast %cst_6 : f32 to vector<16x30xf32>
    %11 = arith.subf %10, %9 : vector<16x30xf32>
    %12 = math.exp %11 : vector<16x30xf32>
    %13 = math.log1p %12 : vector<16x30xf32>
    %14 = arith.addf %8, %13 : vector<16x30xf32>
    %c0_7 = arith.constant 0 : index
    %c0_8 = arith.constant 0 : index
    %15 = vector.load %arg4[%c0_7, %c0_8] : memref<30x30xf32, #tpu.memory_space<vmem>>, vector<30x30xf32>
    %cst_9 = arith.constant dense<0.000000e+00> : vector<16x30xf32>
    %16 = tpu.matmul %14, %15, %cst_9 {dimension_numbers = #tpu.dot_dimension_numbers<[1], [0], [0], [1], [0, 0, 1, 1], [], []>} : vector<16x30xf32>, vector<30x30xf32>, vector<16x30xf32> -> vector<16x30xf32>
    %c0_10 = arith.constant 0 : index
    %c0_11 = arith.constant 0 : index
    %17 = vector.load %arg5[%c0_10, %c0_11] : memref<1x30xf32, #tpu.memory_space<vmem>>, vector<1x30xf32>
    %18 = vector.broadcast %17 : vector<1x30xf32> to vector<16x30xf32>
    %19 = arith.addf %16, %18 : vector<16x30xf32>
    %cst_12 = arith.constant 0.000000e+00 : f32
    %20 = vector.broadcast %cst_12 : f32 to vector<16x30xf32>
    %21 = arith.maximumf %19, %20 : vector<16x30xf32>
    %22 = math.absf %19 : vector<16x30xf32>
    %cst_13 = arith.constant 0.000000e+00 : f32
    %23 = vector.broadcast %cst_13 : f32 to vector<16x30xf32>
    %24 = arith.subf %23, %22 : vector<16x30xf32>
    %25 = math.exp %24 : vector<16x30xf32>
    %26 = math.log1p %25 : vector<16x30xf32>
    %27 = arith.addf %21, %26 : vector<16x30xf32>
    %c0_14 = arith.constant 0 : index
    %c0_15 = arith.constant 0 : index
    %28 = vector.load %arg6[%c0_14, %c0_15] : memref<30x15xf32, #tpu.memory_space<vmem>>, vector<30x15xf32>
    %cst_16 = arith.constant dense<0.000000e+00> : vector<16x15xf32>
    %29 = tpu.matmul %27, %28, %cst_16 {dimension_numbers = #tpu.dot_dimension_numbers<[1], [0], [0], [1], [0, 0, 1, 1], [], []>} : vector<16x30xf32>, vector<30x15xf32>, vector<16x15xf32> -> vector<16x15xf32>
    %c0_17 = arith.constant 0 : index
    %c0_18 = arith.constant 0 : index
    %30 = vector.load %arg7[%c0_17, %c0_18] : memref<1x15xf32, #tpu.memory_space<vmem>>, vector<1x15xf32>
    %31 = vector.broadcast %30 : vector<1x15xf32> to vector<16x15xf32>
    %32 = arith.addf %29, %31 : vector<16x15xf32>
    %c0_19 = arith.constant 0 : index
    %c0_20 = arith.constant 0 : index
    %33 = vector.load %arg8[%c0_19, %c0_20] : memref<16x15xf32, #tpu.memory_space<vmem>>, vector<16x15xf32>
    tpu.vector_store %arg8[%c0_19, %c0_20], %32 {strides = array<i32>} : memref<16x15xf32, #tpu.memory_space<vmem>>, vector<16x15xf32>,
    return
  }
  func.func @transform_0(%arg0: i32) -> (i32, i32) {
    %c0_i32 = arith.constant 0 : i32
    %c0_i32_0 = arith.constant 0 : i32
    return %arg0, %c0_i32 : i32, i32
  }
  func.func @transform_1(%arg0: i32) -> (i32, i32) {
    %c0_i32 = arith.constant 0 : i32
    %c0_i32_0 = arith.constant 0 : i32
    %c0_i32_1 = arith.constant 0 : i32
    return %c0_i32, %c0_i32_0 : i32, i32
  }
  func.func @transform_2(%arg0: i32) -> (i32, i32) {
    %c0_i32 = arith.constant 0 : i32
    %c0_i32_0 = arith.constant 0 : i32
    %c0_i32_1 = arith.constant 0 : i32
    return %c0_i32, %c0_i32_0 : i32, i32
  }
  func.func @transform_3(%arg0: i32) -> (i32, i32) {
    %c0_i32 = arith.constant 0 : i32
    %c0_i32_0 = arith.constant 0 : i32
    %c0_i32_1 = arith.constant 0 : i32
    return %c0_i32, %c0_i32_0 : i32, i32
  }
  func.func @transform_4(%arg0: i32) -> (i32, i32) {
    %c0_i32 = arith.constant 0 : i32
    %c0_i32_0 = arith.constant 0 : i32
    %c0_i32_1 = arith.constant 0 : i32
    return %c0_i32, %c0_i32_0 : i32, i32
  }
  func.func @transform_5(%arg0: i32) -> (i32, i32) {
    %c0_i32 = arith.constant 0 : i32
    %c0_i32_0 = arith.constant 0 : i32
    %c0_i32_1 = arith.constant 0 : i32
    return %c0_i32, %c0_i32_0 : i32, i32
  }
  func.func @transform_6(%arg0: i32) -> (i32, i32) {
    %c0_i32 = arith.constant 0 : i32
    %c0_i32_0 = arith.constant 0 : i32
    %c0_i32_1 = arith.constant 0 : i32
    return %c0_i32, %c0_i32_0 : i32, i32
  }
  func.func @transform_7(%arg0: i32) -> (i32, i32) {
    %c0_i32 = arith.constant 0 : i32
    %c0_i32_0 = arith.constant 0 : i32
    return %arg0, %c0_i32 : i32, i32
  }
}

</mosaic_0001>

<llo_original>
// kernel: tpu_custom_call.1
$region0: #{tpu_custom_call.1}
  #allocation0 [shape = 'u32[]', space=smem, size = 0x4, offset = 0x4, fixed_abs, tag = 'smem constant byte address 0x4 - core index']
  #allocation1 [shape = 'u32[144,128]{1,0:T(1,128)}', space=vmem, size = 0x12000, scoped, tag = 'internal scratch']
  %s0 = inlined_call_operand.vmem [shape: bf16[16,150], index: 0, kind: input, shape index: {}]
  %s1 = inlined_call_operand.vmem [shape: f32[150,30], index: 1, kind: input, shape index: {}]
  %s2 = inlined_call_operand.vmem [shape: f32[1,30], index: 2, kind: input, shape index: {}]
  %s3 = inlined_call_operand.vmem [shape: f32[30,30], index: 3, kind: input, shape index: {}]
  %s4 = inlined_call_operand.vmem [shape: f32[1,30], index: 4, kind: input, shape index: {}]
  %s5 = inlined_call_operand.vmem [shape: f32[30,15], index: 5, kind: input, shape index: {}]
  %s6 = inlined_call_operand.vmem [shape: f32[1,15], index: 6, kind: input, shape index: {}]
  %s7 = inlined_call_operand.hbm [shape: f32[16,15], index: 7, kind: output, shape index: {}]
  %s8 = sld [smem:[#allocation0]]
  $region38: #{tpu_custom_call.1} parent=0
    _
  %s10 = ssub.s32 1, %s8
  %s11 = scalar_select 0, %s10, %s8
  $region1: #{tpu_custom_call.1} parent=0
    #allocation2 [shape = 'u8[8192]{0}', space=vmem, size = 0x2000, scoped, tag = 'output window, operand 0, single buffered']
    #allocation3 [shape = 's32[1]{0}', space=sflag, size = 0x4, scoped, tag = 'scoped memory for tpu_custom_call.1']
    %12 = vsyncpa [#allocation3], 0
    // Predicated region
    $region2: #{tpu_custom_call.1} parent=1 // pred_check
      _
    $region3: #{tpu_custom_call.1} parent=1 // pred_check_branch
      %14 = sbr.rel (0) target = $region5
    $region4: #{tpu_custom_call.1} parent=1 // pred_region
      _
    $region5: #{tpu_custom_call.1} parent=1 // pred_fallthru
      _
    // Predicated region
    $region6: #{tpu_custom_call.1} parent=1 // pred_check
      _
    $region7: #{tpu_custom_call.1} parent=1 // pred_check_branch
      %16 = sbr.rel (0) target = $region9
    $region8: #{tpu_custom_call.1} parent=1 // pred_region
      _
    $region9: #{tpu_custom_call.1} parent=1 // pred_fallthru
      _
    // Predicated region
    $region10: #{tpu_custom_call.1} parent=1 // pred_check
      _
    $region11: #{tpu_custom_call.1} parent=1 // pred_check_branch
      %18 = sbr.rel (0) target = $region13
    $region12: #{tpu_custom_call.1} parent=1 // pred_region
      _
    $region13: #{tpu_custom_call.1} parent=1 // pred_fallthru
      _
    // Predicated region
    $region14: #{tpu_custom_call.1} parent=1 // pred_check
      _
    $region15: #{tpu_custom_call.1} parent=1 // pred_check_branch
      %20 = sbr.rel (0) target = $region17
    $region16: #{tpu_custom_call.1} parent=1 // pred_region
      _
    $region17: #{tpu_custom_call.1} parent=1 // pred_fallthru
      _
    // Predicated region
    $region18: #{tpu_custom_call.1} parent=1 // pred_check
      _
    $region19: #{tpu_custom_call.1} parent=1 // pred_check_branch
      %22 = sbr.rel (0) target = $region21
    $region20: #{tpu_custom_call.1} parent=1 // pred_region
      _
    $region21: #{tpu_custom_call.1} parent=1 // pred_fallthru
      _
    // Predicated region
    $region22: #{tpu_custom_call.1} parent=1 // pred_check
      _
    $region23: #{tpu_custom_call.1} parent=1 // pred_check_branch
      %24 = sbr.rel (0) target = $region25
    $region24: #{tpu_custom_call.1} parent=1 // pred_region
      _
    $region25: #{tpu_custom_call.1} parent=1 // pred_fallthru
      _
    // Predicated region
    $region26: #{tpu_custom_call.1} parent=1 // pred_check
      _
    $region27: #{tpu_custom_call.1} parent=1 // pred_check_branch
      %26 = sbr.rel (0) target = $region29
    $region28: #{tpu_custom_call.1} parent=1 // pred_region
      _
    $region29: #{tpu_custom_call.1} parent=1 // pred_fallthru
      _
    %v27 = vld [vmem:[%s0] sm:$0xff]
    %v28 = vld [vmem:[%s0 + $0x8] sm:$0xff]
    %v29 = vunpack.c.l.bf16 %v27
    %v30 = vunpack.c.h.bf16 %v27
    %v31 = vunpack.c.l.bf16 %v28
    %v32 = vunpack.c.h.bf16 %v28
    %v33 = vld [vmem:[%s1] sm:$0xff]
    %v34 = vld [vmem:[%s1 + $0x8] sm:$0xff]
    %v35 = vld [vmem:[%s1 + $0x10] sm:$0xff]
    %v36 = vld [vmem:[%s1 + $0x18] sm:$0xff]
    %v37 = vld [vmem:[%s1 + $0x20] sm:$0xff]
    %v38 = vld [vmem:[%s1 + $0x28] sm:$0xff]
    %v39 = vld [vmem:[%s1 + $0x30] sm:$0xff]
    %v40 = vld [vmem:[%s1 + $0x38] sm:$0xff]
    %v41 = vld [vmem:[%s1 + $0x40] sm:$0xff]
    %v42 = vld [vmem:[%s1 + $0x48] sm:$0xff]
    %v43 = vld [vmem:[%s1 + $0x50] sm:$0xff]
    %v44 = vld [vmem:[%s1 + $0x58] sm:$0xff]
    %v45 = vld [vmem:[%s1 + $0x60] sm:$0xff]
    %v46 = vld [vmem:[%s1 + $0x68] sm:$0xff]
    %v47 = vld [vmem:[%s1 + $0x70] sm:$0xff]
    %v48 = vld [vmem:[%s1 + $0x78] sm:$0xff]
    %v49 = vld [vmem:[%s1 + $0x80] sm:$0xff]
    %v50 = vld [vmem:[%s1 + $0x88] sm:$0xff]
    %v51 = vld [vmem:[%s1 + $0x90] sm:$0x3f]
    %v52 = vld [vmem:[%s2] sm:$0x1]
    %v54 = vlaneseq
    %v55 = vshrl.u32 %v54, 7
    %v56 = vsub.s32 0, %v55
    %v57 = vrot.slane %v52, %v56
    %vm59 = vcmask 179200
    %v61 = vsel %vm59, %v30, 0
    %v64 = vsel %vm59, %v32, 0
    %vm66 = vcmask 1045504
    %v68 = vsel %vm66, %v51, 0
    %70 = vmatprep.subr.mxu0 0.0
    %71 = vmatpush1.msra.mxu0 %v33
    %72 = vmatprep.subr.mxu0 0.0
    %73 = vmatpush1.msra.mxu0 %v34
    %74 = vmatprep.subr.mxu0 0.0
    %75 = vmatpush1.msra.mxu0 %v35
    %76 = vmatprep.subr.mxu0 0.0
    %77 = vmatpush1.msra.mxu0 %v36
    %78 = vmatprep.subr.mxu0 0.0
    %79 = vmatpush1.msra.mxu0 %v37
    %80 = vmatprep.subr.mxu0 0.0
    %81 = vmatpush1.msra.mxu0 %v38
    %82 = vmatprep.subr.mxu0 0.0
    %83 = vmatpush1.msra.mxu0 %v39
    %84 = vmatprep.subr.mxu0 0.0
    %85 = vmatpush1.msra.mxu0 %v40
    %86 = vmatprep.subr.mxu0 0.0
    %87 = vmatpush1.msra.mxu0 %v41
    %88 = vmatprep.subr.mxu0 0.0
    %89 = vmatpush1.msra.mxu0 %v42
    %90 = vmatprep.subr.mxu0 0.0
    %91 = vmatpush1.msra.mxu0 %v43
    %92 = vmatprep.subr.mxu0 0.0
    %93 = vmatpush1.msra.mxu0 %v44
    %94 = vmatprep.subr.mxu0 0.0
    %95 = vmatpush1.msra.mxu0 %v45
    %96 = vmatprep.subr.mxu0 0.0
    %97 = vmatpush1.msra.mxu0 %v46
    %98 = vmatprep.subr.mxu0 0.0
    %99 = vmatpush1.msra.mxu0 %v47
    %100 = vmatprep.subr.mxu0 0.0
    %101 = vmatpush1.msra.mxu0 %v48
    %102 = vmatprep.subr.mxu0 0.0
    %103 = vmatpush1.msra.mxu0 %v49
    %104 = vmatprep.subr.mxu0 0.0
    %105 = vmatpush1.msra.mxu0 %v50
    %106 = vmatprep.subr.mxu0 0.0
    %107 = vmatpush1.msra.mxu0 %v68
    %108 = vmatprep.subr.mxu0 0.0
    %109 = vmatpush1.msra.mxu0 0.0
    %110 = vmatprep.subr.mxu0 0.0
    %111 = vmatpush1.msra.mxu0 0.0
    %112 = vmatprep.subr.mxu0 0.0
    %113 = vmatpush1.msra.mxu0 0.0
    %114 = vmatprep.subr.mxu0 0.0
    %115 = vmatpush1.msra.mxu0 0.0
    %116 = vmatprep.subr.mxu0 0.0
    %117 = vmatpush1.msra.mxu0 0.0
    %118 = vmatprep.subr.mxu0 0.0
    %119 = vmatpush1.msra.mxu0 0.0
    %120 = vmatprep.subr.mxu0 0.0
    %121 = vmatpush1.msra.mxu0 0.0
    %122 = vmatprep.subr.mxu0 0.0
    %123 = vmatpush1.msra.mxu0 0.0
    %124 = vmatprep.subr.mxu0 0.0
    %125 = vmatpush1.msra.mxu0 0.0
    %126 = vmatprep.subr.mxu0 0.0
    %127 = vmatpush1.msra.mxu0 0.0
    %128 = vmatprep.subr.mxu0 0.0
    %129 = vmatpush1.msra.mxu0 0.0
    %130 = vmatprep.subr.mxu0 0.0
    %131 = vmatpush1.msra.mxu0 0.0
    %132 = vmatprep.subr.mxu0 0.0
    %133 = vmatpush1.msra.mxu0 0.0
    %134 = vmatprep.mubr.f32.mxu0 %v61
    %135 = vmatmul.mubr.f32.gmra.mrb[0].mxu0 %v29
    %v136 = vpop.f32.mrb[0].mxu0
    %v137 = vadd.f32 %v57, %v136
    %v138 = vpop.f32.mrb[0].mxu0
    %139 = vmatprep.mubr.f32.mxu0 %v64
    %140 = vmatmul.mubr.f32.gmra.mrb[0].mxu0 %v31
    %v141 = vpop.f32.mrb[0].mxu0
    %v142 = vadd.f32 %v57, %v141
    %v143 = vpop.f32.mrb[0].mxu0
    %144 = vdwg.mxu0
    %v145 = vmax.f32 %v137, 0.0
    %v146 = vmax.f32 %v142, 0.0
    %v147 = vand.u32 2147483647, %v137
    %v148 = vand.u32 2147483647, %v142
    %v149 = vsub.f32 0.0, %v147
    %v150 = vsub.f32 0.0, %v148
    %v151 = vmul.f32 %v149, 1.442695
    %v152 = vpow.pop %v151
    %v153 = vmul.f32 %v150, 1.442695
    %v154 = vpow.pop %v153
    %v155 = vadd.f32 %v152, 1.0
    %v156 = vlog2.pop %v155
    %v157 = vmul.f32 %v156, 0.6931472
    %v158 = vmul.f32 -0.5, %v152
    %v159 = vadd.f32 %v158, 1.0
    %v160 = vmul.f32 %v159, %v152
    %v161 = vand.u32 2147483647, %v152
    %vm162 = vcmp.lt.f32.partialorder %v161, 0.0004427343
    %v163 = vsel %vm162, %v160, %v157
    %v164 = vadd.f32 %v154, 1.0
    %v165 = vlog2.pop %v164
    %v166 = vmul.f32 %v165, 0.6931472
    %v167 = vmul.f32 -0.5, %v154
    %v168 = vadd.f32 %v167, 1.0
    %v169 = vmul.f32 %v168, %v154
    %v170 = vand.u32 2147483647, %v154
    %vm171 = vcmp.lt.f32.partialorder %v170, 0.0004427343
    %v172 = vsel %vm171, %v169, %v166
    %v173 = vadd.f32 %v145, %v163
    %v174 = vadd.f32 %v146, %v172
    %v175 = vld [vmem:[%s3] sm:$0xff]
    %v176 = vld [vmem:[%s3 + $0x8] sm:$0xff]
    %v177 = vld [vmem:[%s3 + $0x10] sm:$0xff]
    %v178 = vld [vmem:[%s3 + $0x18] sm:$0x3f]
    %v179 = vld [vmem:[%s4] sm:$0x1]
    %v181 = vlaneseq
    %v182 = vshrl.u32 %v181, 7
    %v183 = vsub.s32 0, %v182
    %v184 = vrot.slane %v179, %v183
    %vm186 = vcmask 244736
    %v188 = vsel %vm186, %v173, 0
    %v191 = vsel %vm186, %v174, 0
    %v194 = vsel %vm66, %v178, 0
    %196 = vmatprep.subr.mxu0 0.0
    %197 = vmatpush1.msra.mxu0 %v175
    %198 = vmatprep.subr.mxu0 0.0
    %199 = vmatpush1.msra.mxu0 %v176
    %200 = vmatprep.subr.mxu0 0.0
    %201 = vmatpush1.msra.mxu0 %v177
    %202 = vmatprep.subr.mxu0 0.0
    %203 = vmatpush1.msra.mxu0 %v194
    %204 = vmatprep.subr.mxu0 0.0
    %205 = vmatpush1.msra.mxu0 0.0
    %206 = vmatprep.subr.mxu0 0.0
    %207 = vmatpush1.msra.mxu0 0.0
    %208 = vmatprep.subr.mxu0 0.0
    %209 = vmatpush1.msra.mxu0 0.0
    %210 = vmatprep.subr.mxu0 0.0
    %211 = vmatpush1.msra.mxu0 0.0
    %212 = vmatprep.subr.mxu0 0.0
    %213 = vmatpush1.msra.mxu0 0.0
    %214 = vmatprep.subr.mxu0 0.0
    %215 = vmatpush1.msra.mxu0 0.0
    %216 = vmatprep.subr.mxu0 0.0
    %217 = vmatpush1.msra.mxu0 0.0
    %218 = vmatprep.subr.mxu0 0.0
    %219 = vmatpush1.msra.mxu0 0.0
    %220 = vmatprep.subr.mxu0 0.0
    %221 = vmatpush1.msra.mxu0 0.0
    %222 = vmatprep.subr.mxu0 0.0
    %223 = vmatpush1.msra.mxu0 0.0
    %224 = vmatprep.subr.mxu0 0.0
    %225 = vmatpush1.msra.mxu0 0.0
    %226 = vmatprep.subr.mxu0 0.0
    %227 = vmatpush1.msra.mxu0 0.0
    %228 = vmatprep.subr.mxu0 0.0
    %229 = vmatpush1.msra.mxu0 0.0
    %230 = vmatprep.subr.mxu0 0.0
    %231 = vmatpush1.msra.mxu0 0.0
    %232 = vmatprep.subr.mxu0 0.0
    %233 = vmatpush1.msra.mxu0 0.0
    %234 = vmatprep.subr.mxu0 0.0
    %235 = vmatpush1.msra.mxu0 0.0
    %236 = vmatprep.subr.mxu0 0.0
    %237 = vmatpush1.msra.mxu0 0.0
    %238 = vmatprep.subr.mxu0 0.0
    %239 = vmatpush1.msra.mxu0 0.0
    %240 = vmatprep.subr.mxu0 0.0
    %241 = vmatpush1.msra.mxu0 0.0
    %242 = vmatprep.subr.mxu0 0.0
    %243 = vmatpush1.msra.mxu0 0.0
    %244 = vmatprep.subr.mxu0 0.0
    %245 = vmatpush1.msra.mxu0 0.0
    %246 = vmatprep.subr.mxu0 0.0
    %247 = vmatpush1.msra.mxu0 0.0
    %248 = vmatprep.subr.mxu0 0.0
    %249 = vmatpush1.msra.mxu0 0.0
    %250 = vmatprep.subr.mxu0 0.0
    %251 = vmatpush1.msra.mxu0 0.0
    %252 = vmatprep.subr.mxu0 0.0
    %253 = vmatpush1.msra.mxu0 0.0
    %254 = vmatprep.subr.mxu0 0.0
    %255 = vmatpush1.msra.mxu0 0.0
    %256 = vmatprep.subr.mxu0 0.0
    %257 = vmatpush1.msra.mxu0 0.0
    %258 = vmatprep.subr.mxu0 0.0
    %259 = vmatpush1.msra.mxu0 0.0
    %260 = vmatprep.mubr.f32.mxu0 0.0
    %261 = vmatmul.mubr.f32.gmra.mrb[0].mxu0 %v188
    %v262 = vpop.f32.mrb[0].mxu0
    %v263 = vadd.f32 %v184, %v262
    %v264 = vpop.f32.mrb[0].mxu0
    %265 = vmatprep.mubr.f32.mxu0 0.0
    %266 = vmatmul.mubr.f32.gmra.mrb[0].mxu0 %v191
    %v267 = vpop.f32.mrb[0].mxu0
    %v268 = vadd.f32 %v184, %v267
    %v269 = vpop.f32.mrb[0].mxu0
    %270 = vdwg.mxu0
    %v271 = vmax.f32 %v263, 0.0
    %v272 = vmax.f32 %v268, 0.0
    %v273 = vand.u32 2147483647, %v263
    %v274 = vand.u32 2147483647, %v268
    %v275 = vsub.f32 0.0, %v273
    %v276 = vsub.f32 0.0, %v274
    %v277 = vmul.f32 %v275, 1.442695
    %v278 = vpow.pop %v277
    %v279 = vmul.f32 %v276, 1.442695
    %v280 = vpow.pop %v279
    %v281 = vadd.f32 %v278, 1.0
    %v282 = vlog2.pop %v281
    %v283 = vmul.f32 %v282, 0.6931472
    %v284 = vmul.f32 -0.5, %v278
    %v285 = vadd.f32 %v284, 1.0
    %v286 = vmul.f32 %v285, %v278
    %v287 = vand.u32 2147483647, %v278
    %vm288 = vcmp.lt.f32.partialorder %v287, 0.0004427343
    %v289 = vsel %vm288, %v286, %v283
    %v290 = vadd.f32 %v280, 1.0
    %v291 = vlog2.pop %v290
    %v292 = vmul.f32 %v291, 0.6931472
    %v293 = vmul.f32 -0.5, %v280
    %v294 = vadd.f32 %v293, 1.0
    %v295 = vmul.f32 %v294, %v280
    %v296 = vand.u32 2147483647, %v280
    %vm297 = vcmp.lt.f32.partialorder %v296, 0.0004427343
    %v298 = vsel %vm297, %v295, %v292
    %v299 = vadd.f32 %v271, %v289
    %v300 = vadd.f32 %v272, %v298
    %v301 = vld [vmem:[%s5] sm:$0xff]
    %v302 = vld [vmem:[%s5 + $0x8] sm:$0xff]
    %v303 = vld [vmem:[%s5 + $0x10] sm:$0xff]
    %v304 = vld [vmem:[%s5 + $0x18] sm:$0x3f]
    %v305 = vld [vmem:[%s6] sm:$0x1]
    %v307 = vlaneseq
    %v308 = vshrl.u32 %v307, 7
    %v309 = vsub.s32 0, %v308
    %v310 = vrot.slane %v305, %v309
    %v313 = vsel %vm186, %v299, 0
    %v316 = vsel %vm186, %v300, 0
    %v319 = vsel %vm66, %v304, 0
    %321 = vmatprep.subr.mxu0 0.0
    %322 = vmatpush1.msra.mxu0 %v301
    %323 = vmatprep.subr.mxu0 0.0
    %324 = vmatpush1.msra.mxu0 %v302
    %325 = vmatprep.subr.mxu0 0.0
    %326 = vmatpush1.msra.mxu0 %v303
    %327 = vmatprep.subr.mxu0 0.0
    %328 = vmatpush1.msra.mxu0 %v319
    %329 = vmatprep.subr.mxu0 0.0
    %330 = vmatpush1.msra.mxu0 0.0
    %331 = vmatprep.subr.mxu0 0.0
    %332 = vmatpush1.msra.mxu0 0.0
    %333 = vmatprep.subr.mxu0 0.0
    %334 = vmatpush1.msra.mxu0 0.0
    %335 = vmatprep.subr.mxu0 0.0
    %336 = vmatpush1.msra.mxu0 0.0
    %337 = vmatprep.subr.mxu0 0.0
    %338 = vmatpush1.msra.mxu0 0.0
    %339 = vmatprep.subr.mxu0 0.0
    %340 = vmatpush1.msra.mxu0 0.0
    %341 = vmatprep.subr.mxu0 0.0
    %342 = vmatpush1.msra.mxu0 0.0
    %343 = vmatprep.subr.mxu0 0.0
    %344 = vmatpush1.msra.mxu0 0.0
    %345 = vmatprep.subr.mxu0 0.0
    %346 = vmatpush1.msra.mxu0 0.0
    %347 = vmatprep.subr.mxu0 0.0
    %348 = vmatpush1.msra.mxu0 0.0
    %349 = vmatprep.subr.mxu0 0.0
    %350 = vmatpush1.msra.mxu0 0.0
    %351 = vmatprep.subr.mxu0 0.0
    %352 = vmatpush1.msra.mxu0 0.0
    %353 = vmatprep.subr.mxu0 0.0
    %354 = vmatpush1.msra.mxu0 0.0
    %355 = vmatprep.subr.mxu0 0.0
    %356 = vmatpush1.msra.mxu0 0.0
    %357 = vmatprep.subr.mxu0 0.0
    %358 = vmatpush1.msra.mxu0 0.0
    %359 = vmatprep.subr.mxu0 0.0
    %360 = vmatpush1.msra.mxu0 0.0
    %361 = vmatprep.subr.mxu0 0.0
    %362 = vmatpush1.msra.mxu0 0.0
    %363 = vmatprep.subr.mxu0 0.0
    %364 = vmatpush1.msra.mxu0 0.0
    %365 = vmatprep.subr.mxu0 0.0
    %366 = vmatpush1.msra.mxu0 0.0
    %367 = vmatprep.subr.mxu0 0.0
    %368 = vmatpush1.msra.mxu0 0.0
    %369 = vmatprep.subr.mxu0 0.0
    %370 = vmatpush1.msra.mxu0 0.0
    %371 = vmatprep.subr.mxu0 0.0
    %372 = vmatpush1.msra.mxu0 0.0
    %373 = vmatprep.subr.mxu0 0.0
    %374 = vmatpush1.msra.mxu0 0.0
    %375 = vmatprep.subr.mxu0 0.0
    %376 = vmatpush1.msra.mxu0 0.0
    %377 = vmatprep.subr.mxu0 0.0
    %378 = vmatpush1.msra.mxu0 0.0
    %379 = vmatprep.subr.mxu0 0.0
    %380 = vmatpush1.msra.mxu0 0.0
    %381 = vmatprep.subr.mxu0 0.0
    %382 = vmatpush1.msra.mxu0 0.0
    %383 = vmatprep.subr.mxu0 0.0
    %384 = vmatpush1.msra.mxu0 0.0
    %385 = vmatprep.mubr.f32.mxu0 0.0
    %386 = vmatmul.mubr.f32.gmra.mrb[0].mxu0 %v313
    %v387 = vpop.f32.mrb[0].mxu0
    %v388 = vadd.f32 %v310, %v387
    %v389 = vpop.f32.mrb[0].mxu0
    %390 = vmatprep.mubr.f32.mxu0 0.0
    %391 = vmatmul.mubr.f32.gmra.mrb[0].mxu0 %v316
    %v392 = vpop.f32.mrb[0].mxu0
    %v393 = vadd.f32 %v310, %v392
    %v394 = vpop.f32.mrb[0].mxu0
    %395 = vdwg.mxu0
    %vm396 = vcmask 121856
    %397 = vst.msk [vmem:[#allocation2] sm:$0xff] %vm396, %v388
    %398 = vst.msk [vmem:[#allocation2 + $0x8] sm:$0xff] %vm396, %v393
    // Predicated region
    $region30: #{tpu_custom_call.1} parent=1 // pred_check
      _
    $region31: #{tpu_custom_call.1} parent=1 // pred_check_branch
      %400 = sbr.rel (0) target = $region33
    $region32: #{tpu_custom_call.1} parent=1 // pred_region
      %s402 = ssub.s32 256, 256
      %403 = vsyncadd [#allocation3], %s402
      %s404 = sshll.u32 [#allocation2], 4
      %s405 = int_to_ptr.vmem [resolvable:$true] %s404
      %410 = dma.vmem_to_hbm [thread:$0]  %s405, 256, %s7, [#allocation3], 128, 128, 8
    $region33: #{tpu_custom_call.1} parent=1 // pred_fallthru
      _
    // Predicated region
    $region34: #{tpu_custom_call.1} parent=1 // pred_check
      _
    $region35: #{tpu_custom_call.1} parent=1 // pred_check_branch
      %412 = sbr.rel (0) target = $region37
    $region36: #{tpu_custom_call.1} parent=1 // pred_region
      %413 = dma.done [#allocation3], 256
    $region37: #{tpu_custom_call.1} parent=1 // pred_fallthru
      _
    %414 = vsyncpa [#allocation3], 1

</llo_original>
